<compile_context>
chip_gen: v7x
topology: tpu7x:2x2x1
jax: 0.10.0
libtpu: 0.0.40
codegen_flags: <defaults>
</compile_context>

<pallas_src>
import jax
import jax.numpy as jnp
from jax.experimental import pallas as pl
from jax.experimental.pallas import tpu as pltpu

LANE = 128            # all feature dims packed into one 128-lane block
SUBLANE = 8
MAX_BATCH_TILE = 1024  # large batch tiles amortize ~0.35us/step grid overhead


def _round_up(x, m):
    return ((x + m - 1) // m) * m


def mlp_kernel(x_ref, w_ref, b_ref, o_ref, xp_ref):
    # x_ref : (TB, n_in)  f32   natural-shaped activations
    # w_ref : (128, 128)  f32   single packed weight block (3 layers, disjoint ranges)
    # b_ref : (8, 128)    f32   rows 0..2 hold b1/b2/b3 in their layers' lane ranges
    # o_ref : (TB, n_out) f32   natural-shaped output
    # xp_ref: (TB, 128)   f32   VMEM scratch: lane-widened activations
    n_in = x_ref.shape[1]
    n_out = o_ref.shape[1]

    # Zero the padding lanes once (they are never overwritten afterwards);
    # lanes [0, n_in) are refreshed from x every grid step.
    @pl.when(pl.program_id(0) == 0)
    def _():
        xp_ref[...] = jnp.zeros_like(xp_ref)

    xp_ref[:, :n_in] = x_ref[...]

    a = xp_ref[...]
    a = jnp.maximum(
        jnp.dot(a, w_ref[...], preferred_element_type=jnp.float32) + b_ref[0:1, :], 0.0)
    a = jnp.maximum(
        jnp.dot(a, w_ref[...], preferred_element_type=jnp.float32) + b_ref[1:2, :], 0.0)
    a = jnp.dot(a, w_ref[...], preferred_element_type=jnp.float32) + b_ref[2:3, :]

    o_ref[...] = a[:, :n_out].astype(o_ref.dtype)


def pack_params(w1, b1, w2, b2, w3, b3):
    """Pack the three linear layers into one (128,128) weight block + (8,128) biases.

    Weights are stored (in_features, out_features) (i.e. transposed vs nn.Linear).
    Layout (row range of W == lane range of that layer's input activation):
        x  : lanes [0, n_in)
        w1 : rows [0, n_in)              -> h1 lanes [h1_off, h1_off + h1)
        w2 : rows [h1_off, h1_off + h1)  -> h2 lanes [h2_off, h2_off + h2)
        w3 : rows [h2_off, h2_off + h2)  -> out lanes [0, n_out)
    """
    n_in, h1 = w1.shape
    _, h2 = w2.shape
    _, n_out = w3.shape

    h1_off = _round_up(n_in, SUBLANE)
    h2_off = h1_off + _round_up(h1, SUBLANE)
    out_off = 0

    # Disjoint row ranges + everything within one 128-lane block.
    assert h1_off >= n_in and h2_off >= h1_off + h1, "row ranges must be disjoint"
    assert h2_off + h2 <= LANE, "packed layers exceed one 128-lane block"
    assert n_out <= LANE, "output width exceeds one 128-lane block"

    W = jnp.zeros((LANE, LANE), jnp.float32)
    W = W.at[0:n_in, h1_off:h1_off + h1].set(w1.astype(jnp.float32))
    W = W.at[h1_off:h1_off + h1, h2_off:h2_off + h2].set(w2.astype(jnp.float32))
    W = W.at[h2_off:h2_off + h2, out_off:out_off + n_out].set(w3.astype(jnp.float32))

    B = jnp.zeros((SUBLANE, LANE), jnp.float32)
    B = B.at[0, h1_off:h1_off + h1].set(b1.reshape(-1).astype(jnp.float32))
    B = B.at[1, h2_off:h2_off + h2].set(b2.reshape(-1).astype(jnp.float32))
    B = B.at[2, out_off:out_off + n_out].set(b3.reshape(-1).astype(jnp.float32))
    return W, B


def mlp_forward(x, w_block, b_block, out_features):
    B, n_in = x.shape
    tile_b = B if B <= MAX_BATCH_TILE else MAX_BATCH_TILE
    grid = (pl.cdiv(B, tile_b),)

    return pl.pallas_call(
        mlp_kernel,
        out_shape=jax.ShapeDtypeStruct((B, out_features), jnp.float32),
        grid=grid,
        in_specs=[
            pl.BlockSpec((tile_b, n_in), lambda i: (i, 0)),
            pl.BlockSpec((LANE, LANE), lambda i: (0, 0)),      # VMEM-resident weights
            pl.BlockSpec((SUBLANE, LANE), lambda i: (0, 0)),   # VMEM-resident biases
        ],
        out_specs=pl.BlockSpec((tile_b, out_features), lambda i: (i, 0)),
        scratch_shapes=[pltpu.VMEM((tile_b, LANE), jnp.float32)],
        compiler_params=pltpu.CompilerParams(
            dimension_semantics=("parallel",)),
    )(x, w_block, b_block)


def init_linear(key, in_f, out_f):
    # Deterministic init mimicking nn.Linear default: U(-1/sqrt(in), 1/sqrt(in)).
    kw, kb = jax.random.split(key)
    bound = 1.0 / jnp.sqrt(jnp.float32(in_f))
    w = jax.random.uniform(kw, (in_f, out_f), jnp.float32, -bound, bound)  # pre-transposed
    b = jax.random.uniform(kb, (out_f,), jnp.float32, -bound, bound)
    return w, b


if __name__ == "__main__":
    in_features, h1, h2, out_features = 25, 20, 10, 11
    batch = 8

    key = jax.random.PRNGKey(0)
    kx, k1, k2, k3 = jax.random.split(key, 4)

    x = jax.random.normal(kx, (batch, in_features), jnp.float32)
    w1, b1 = init_linear(k1, in_features, h1)
    w2, b2 = init_linear(k2, h1, h2)
    w3, b3 = init_linear(k3, h2, out_features)

    # Pack parameters once (amortized across any number of forward calls).
    w_block, b_block = pack_params(w1, b1, w2, b2, w3, b3)

    y = mlp_forward(x, w_block, b_block, out_features)
    jax.block_until_ready(y)

    # Reference check (plain JAX, same default matmul precision path).
    ref = jnp.maximum(x @ w1 + b1, 0.0)
    ref = jnp.maximum(ref @ w2 + b2, 0.0)
    ref = ref @ w3 + b3

    assert y.shape == (batch, out_features)
    assert jnp.allclose(y, ref, atol=1e-4), "mismatch vs reference"

    print("KERNEL_OK")
</pallas_src>

<mosaic_0001>
module attributes {stable_mosaic.version = 11 : i64} {
  func.func @mlp_kernel(%arg0: i32, %arg1: memref<8x25xf32, #tpu.memory_space<vmem>>, %arg2: memref<128x128xf32, #tpu.memory_space<vmem>>, %arg3: memref<8x128xf32, #tpu.memory_space<vmem>>, %arg4: memref<8x11xf32, #tpu.memory_space<vmem>>, %arg5: memref<8x128xf32, #tpu.memory_space<vmem>>) attributes {dimension_semantics = [#tpu.dimension_semantics<parallel>], iteration_bounds = array<i64: 1>, scalar_prefetch = 0 : i64, scratch_operands = 1 : i64, tpu.core_type = #tpu.core_type<tc>, window_params = [{transform_indices = @transform_0, window_bounds = array<i64: 8, 25>}, {pipeline_mode = #tpu.pipeline_mode<synchronous>, transform_indices = @transform_1, window_bounds = array<i64: 128, 128>}, {pipeline_mode = #tpu.pipeline_mode<synchronous>, transform_indices = @transform_2, window_bounds = array<i64: 8, 128>}, {transform_indices = @transform_3, window_bounds = array<i64: 8, 11>}]} {
    %c0_i32 = arith.constant 0 : i32
    %0 = arith.cmpi eq, %arg0, %c0_i32 : i32
    %1 = arith.extui %0 : i1 to i32
    %c0_i32_0 = arith.constant 0 : i32
    %2 = arith.cmpi ne, %1, %c0_i32_0 : i32
    scf.if %2 {
      %cst_22 = arith.constant 0.000000e+00 : f32
      %27 = vector.broadcast %cst_22 : f32 to vector<8x128xf32>
      %c0_23 = arith.constant 0 : index
      %c0_24 = arith.constant 0 : index
      %28 = vector.load %arg5[%c0_23, %c0_24] : memref<8x128xf32, #tpu.memory_space<vmem>>, vector<8x128xf32>
      tpu.vector_store %arg5[%c0_23, %c0_24], %27 {strides = array<i32>} : memref<8x128xf32, #tpu.memory_space<vmem>>, vector<8x128xf32>,
    } else {
    }
    %c0 = arith.constant 0 : index
    %c0_1 = arith.constant 0 : index
    %3 = vector.load %arg1[%c0, %c0_1] : memref<8x25xf32, #tpu.memory_space<vmem>>, vector<8x25xf32>
    %c0_2 = arith.constant 0 : index
    %c0_3 = arith.constant 0 : index
    %4 = vector.load %arg5[%c0_2, %c0_3] : memref<8x128xf32, #tpu.memory_space<vmem>>, vector<8x25xf32>
    tpu.vector_store %arg5[%c0_2, %c0_3], %3 {strides = array<i32>} : memref<8x128xf32, #tpu.memory_space<vmem>>, vector<8x25xf32>,
    %c0_4 = arith.constant 0 : index
    %c0_5 = arith.constant 0 : index
    %5 = vector.load %arg5[%c0_4, %c0_5] : memref<8x128xf32, #tpu.memory_space<vmem>>, vector<8x128xf32>
    %c0_6 = arith.constant 0 : index
    %c0_7 = arith.constant 0 : index
    %6 = vector.load %arg2[%c0_6, %c0_7] : memref<128x128xf32, #tpu.memory_space<vmem>>, vector<128x128xf32>
    %cst = arith.constant dense<0.000000e+00> : vector<8x128xf32>
    %7 = tpu.matmul %5, %6, %cst {dimension_numbers = #tpu.dot_dimension_numbers<[1], [0], [0], [1], [0, 0, 1, 1], [], []>} : vector<8x128xf32>, vector<128x128xf32>, vector<8x128xf32> -> vector<8x128xf32>
    %c0_8 = arith.constant 0 : index
    %c0_9 = arith.constant 0 : index
    %8 = vector.load %arg3[%c0_8, %c0_9] : memref<8x128xf32, #tpu.memory_space<vmem>>, vector<1x128xf32>
    %9 = vector.broadcast %8 : vector<1x128xf32> to vector<8x128xf32>
    %10 = arith.addf %7, %9 : vector<8x128xf32>
    %cst_10 = arith.constant 0.000000e+00 : f32
    %11 = vector.broadcast %cst_10 : f32 to vector<8x128xf32>
    %12 = arith.maximumf %10, %11 : vector<8x128xf32>
    %c0_11 = arith.constant 0 : index
    %c0_12 = arith.constant 0 : index
    %13 = vector.load %arg2[%c0_11, %c0_12] : memref<128x128xf32, #tpu.memory_space<vmem>>, vector<128x128xf32>
    %cst_13 = arith.constant dense<0.000000e+00> : vector<8x128xf32>
    %14 = tpu.matmul %12, %13, %cst_13 {dimension_numbers = #tpu.dot_dimension_numbers<[1], [0], [0], [1], [0, 0, 1, 1], [], []>} : vector<8x128xf32>, vector<128x128xf32>, vector<8x128xf32> -> vector<8x128xf32>
    %c1 = arith.constant 1 : index
    %c0_14 = arith.constant 0 : index
    %15 = vector.load %arg3[%c1, %c0_14] : memref<8x128xf32, #tpu.memory_space<vmem>>, vector<1x128xf32>
    %16 = vector.broadcast %15 : vector<1x128xf32> to vector<8x128xf32>
    %17 = arith.addf %14, %16 : vector<8x128xf32>
    %cst_15 = arith.constant 0.000000e+00 : f32
    %18 = vector.broadcast %cst_15 : f32 to vector<8x128xf32>
    %19 = arith.maximumf %17, %18 : vector<8x128xf32>
    %c0_16 = arith.constant 0 : index
    %c0_17 = arith.constant 0 : index
    %20 = vector.load %arg2[%c0_16, %c0_17] : memref<128x128xf32, #tpu.memory_space<vmem>>, vector<128x128xf32>
    %cst_18 = arith.constant dense<0.000000e+00> : vector<8x128xf32>
    %21 = tpu.matmul %19, %20, %cst_18 {dimension_numbers = #tpu.dot_dimension_numbers<[1], [0], [0], [1], [0, 0, 1, 1], [], []>} : vector<8x128xf32>, vector<128x128xf32>, vector<8x128xf32> -> vector<8x128xf32>
    %c2 = arith.constant 2 : index
    %c0_19 = arith.constant 0 : index
    %22 = vector.load %arg3[%c2, %c0_19] : memref<8x128xf32, #tpu.memory_space<vmem>>, vector<1x128xf32>
    %23 = vector.broadcast %22 : vector<1x128xf32> to vector<8x128xf32>
    %24 = arith.addf %21, %23 : vector<8x128xf32>
    %25 = vector.extract_strided_slice %24 {offsets = [0, 0], sizes = [8, 11], strides = [1, 1]} : vector<8x128xf32> to vector<8x11xf32>
    %c0_20 = arith.constant 0 : index
    %c0_21 = arith.constant 0 : index
    %26 = vector.load %arg4[%c0_20, %c0_21] : memref<8x11xf32, #tpu.memory_space<vmem>>, vector<8x11xf32>
    tpu.vector_store %arg4[%c0_20, %c0_21], %25 {strides = array<i32>} : memref<8x11xf32, #tpu.memory_space<vmem>>, vector<8x11xf32>,
    return
  }
  func.func @transform_0(%arg0: i32) -> (i32, i32) {
    %c0_i32 = arith.constant 0 : i32
    %c0_i32_0 = arith.constant 0 : i32
    return %arg0, %c0_i32 : i32, i32
  }
  func.func @transform_1(%arg0: i32) -> (i32, i32) {
    %c0_i32 = arith.constant 0 : i32
    %c0_i32_0 = arith.constant 0 : i32
    %c0_i32_1 = arith.constant 0 : i32
    return %c0_i32, %c0_i32_0 : i32, i32
  }
  func.func @transform_2(%arg0: i32) -> (i32, i32) {
    %c0_i32 = arith.constant 0 : i32
    %c0_i32_0 = arith.constant 0 : i32
    %c0_i32_1 = arith.constant 0 : i32
    return %c0_i32, %c0_i32_0 : i32, i32
  }
  func.func @transform_3(%arg0: i32) -> (i32, i32) {
    %c0_i32 = arith.constant 0 : i32
    %c0_i32_0 = arith.constant 0 : i32
    return %arg0, %c0_i32 : i32, i32
  }
}

</mosaic_0001>

<llo_original>
// kernel: tpu_custom_call.1
$region0: #{tpu_custom_call.1}
  #allocation0 [shape = 'u32[]', space=smem, size = 0x4, offset = 0x4, fixed_abs, tag = 'smem constant byte address 0x4 - core index']
  #allocation1 [shape = 'u32[144,128]{1,0:T(1,128)}', space=vmem, size = 0x12000, scoped, tag = 'internal scratch']
  #allocation2 [shape = 'f32[8,128]{1,0:T(8,128)}', space=vmem, size = 0x1000, scoped, tag = 'scratch operand']
  %s0 = inlined_call_operand.hbm [shape: f32[8,25], index: 0, kind: input, shape index: {}]
  %s1 = inlined_call_operand.hbm [shape: f32[128,128], index: 1, kind: input, shape index: {}]
  %s2 = inlined_call_operand.hbm [shape: f32[8,128], index: 2, kind: input, shape index: {}]
  %s3 = inlined_call_operand.hbm [shape: f32[8,11], index: 3, kind: output, shape index: {}]
  %s4 = sld [smem:[#allocation0]]
  $region38: #{tpu_custom_call.1} parent=0
    _
  %s6 = ssub.s32 1, %s4
  %s7 = scalar_select 0, %s6, %s4
  $region1: #{tpu_custom_call.1} parent=0
    #allocation3 [shape = 'u8[4096]{0}', space=vmem, size = 0x1000, scoped, tag = 'input window, operand 0, single buffered']
    #allocation4 [shape = 's32[1]{0}', space=sflag, size = 0x4, scoped, tag = 'scoped memory for tpu_custom_call.1']
    #allocation5 [shape = 's32[1]{0}', space=sflag, size = 0x4, scoped, tag = 'scoped memory for tpu_custom_call.1']
    #allocation6 [shape = 'u8[65536]{0}', space=vmem, size = 0x10000, scoped, tag = 'input window, operand 1, single buffered']
    #allocation7 [shape = 's32[1]{0}', space=sflag, size = 0x4, scoped, tag = 'scoped memory for tpu_custom_call.1']
    #allocation8 [shape = 'u8[4096]{0}', space=vmem, size = 0x1000, scoped, tag = 'input window, operand 2, single buffered']
    #allocation9 [shape = 'u8[4096]{0}', space=vmem, size = 0x1000, scoped, tag = 'output window, operand 0, single buffered']
    %8 = vsyncpa [#allocation4], 0
    %9 = vsyncpa [#allocation7], 0
    %10 = vsyncpa [#allocation5], 0
    // Predicated region
    $region2: #{tpu_custom_call.1} parent=1 // pred_check
      _
    $region3: #{tpu_custom_call.1} parent=1 // pred_check_branch
      %12 = sbr.rel (0) target = $region5
    $region4: #{tpu_custom_call.1} parent=1 // pred_region
      %s14 = ssub.s32 128, 128
      %15 = vsyncadd [#allocation4], %s14
      %s17 = sshll.u32 [#allocation3], 4
      %s18 = int_to_ptr.vmem [resolvable:$true] %s17
      %20 = dma.hbm_to_vmem [thread:$0]  %s0, 128, %s18, [#allocation4]
    $region5: #{tpu_custom_call.1} parent=1 // pred_fallthru
      _
    // Predicated region
    $region6: #{tpu_custom_call.1} parent=1 // pred_check
      _
    $region7: #{tpu_custom_call.1} parent=1 // pred_check_branch
      %22 = sbr.rel (0) target = $region9
    $region8: #{tpu_custom_call.1} parent=1 // pred_region
      %s24 = ssub.s32 2048, 2048
      %25 = vsyncadd [#allocation7], %s24
      %s26 = sshll.u32 [#allocation6], 4
      %s27 = int_to_ptr.vmem [resolvable:$true] %s26
      %32 = dma.hbm_to_vmem [thread:$0]  %s1, 2048, %s27, [#allocation7], 128, 128, 8
    $region9: #{tpu_custom_call.1} parent=1 // pred_fallthru
      _
    // Predicated region
    $region10: #{tpu_custom_call.1} parent=1 // pred_check
      _
    $region11: #{tpu_custom_call.1} parent=1 // pred_check_branch
      %34 = sbr.rel (0) target = $region13
    $region12: #{tpu_custom_call.1} parent=1 // pred_region
      %s36 = ssub.s32 128, 128
      %37 = vsyncadd [#allocation7], %s36
      %s39 = sshll.u32 [#allocation8], 4
      %s40 = int_to_ptr.vmem [resolvable:$true] %s39
      %42 = dma.hbm_to_vmem [thread:$0]  %s2, 128, %s40, [#allocation7]
    $region13: #{tpu_custom_call.1} parent=1 // pred_fallthru
      _
    // Predicated region
    $region14: #{tpu_custom_call.1} parent=1 // pred_check
      _
    $region15: #{tpu_custom_call.1} parent=1 // pred_check_branch
      %44 = sbr.rel (0) target = $region17
    $region16: #{tpu_custom_call.1} parent=1 // pred_region
      %45 = dma.done [#allocation4], 128
    $region17: #{tpu_custom_call.1} parent=1 // pred_fallthru
      _
    // Predicated region
    $region18: #{tpu_custom_call.1} parent=1 // pred_check
      _
    $region19: #{tpu_custom_call.1} parent=1 // pred_check_branch
      %47 = sbr.rel (0) target = $region21
    $region20: #{tpu_custom_call.1} parent=1 // pred_region
      %48 = dma.done [#allocation7], 2048
    $region21: #{tpu_custom_call.1} parent=1 // pred_fallthru
      _
    // Predicated region
    $region22: #{tpu_custom_call.1} parent=1 // pred_check
      _
    $region23: #{tpu_custom_call.1} parent=1 // pred_check_branch
      %50 = sbr.rel (0) target = $region25
    $region24: #{tpu_custom_call.1} parent=1 // pred_region
      %51 = dma.done [#allocation7], 128
    $region25: #{tpu_custom_call.1} parent=1 // pred_fallthru
      _
    %p52 = scmp.eq.s32.totalorder 0, 0
    // Predicated region
    $region26: #{tpu_custom_call.1} parent=1 // pred_check
      %p53 = pneg %p52
    $region27: #{tpu_custom_call.1} parent=1 // pred_check_branch
      %55 = sbr.rel (%p53) target = $region29
    $region28: #{tpu_custom_call.1} parent=1 // pred_region
      %56 = vst [vmem:[#allocation2] sm:$0xff] 0.0
    $region29: #{tpu_custom_call.1} parent=1 // pred_fallthru
      _
    %v57 = vld [vmem:[#allocation3] sm:$0xff]
    %vm58 = vcmask 203776
    %59 = vst.msk [vmem:[#allocation2] sm:$0xff] %vm58, %v57
    %v60 = vld [vmem:[#allocation2] sm:$0xff]
    %v61 = vld [vmem:[#allocation6] sm:$0xff]
    %v62 = vld [vmem:[#allocation6 + $0x8] sm:$0xff]
    %v63 = vld [vmem:[#allocation6 + $0x10] sm:$0xff]
    %v64 = vld [vmem:[#allocation6 + $0x18] sm:$0xff]
    %v65 = vld [vmem:[#allocation6 + $0x20] sm:$0xff]
    %v66 = vld [vmem:[#allocation6 + $0x28] sm:$0xff]
    %v67 = vld [vmem:[#allocation6 + $0x30] sm:$0xff]
    %v68 = vld [vmem:[#allocation6 + $0x38] sm:$0xff]
    %v69 = vld [vmem:[#allocation6 + $0x40] sm:$0xff]
    %v70 = vld [vmem:[#allocation6 + $0x48] sm:$0xff]
    %v71 = vld [vmem:[#allocation6 + $0x50] sm:$0xff]
    %v72 = vld [vmem:[#allocation6 + $0x58] sm:$0xff]
    %v73 = vld [vmem:[#allocation6 + $0x60] sm:$0xff]
    %v74 = vld [vmem:[#allocation6 + $0x68] sm:$0xff]
    %v75 = vld [vmem:[#allocation6 + $0x70] sm:$0xff]
    %v76 = vld [vmem:[#allocation6 + $0x78] sm:$0xff]
    %v77 = vld [vmem:[#allocation8] sm:$0x1]
    %v78 = vlaneseq
    %v79 = vshrl.u32 %v78, 7
    %v80 = vsub.s32 0, %v79
    %v81 = vrot.slane %v77, %v80
    %82 = vmatprep.subr.mxu0 0.0
    %83 = vmatpush1.msra.mxu0 %v61
    %84 = vmatprep.subr.mxu0 0.0
    %85 = vmatpush1.msra.mxu0 %v62
    %86 = vmatprep.subr.mxu0 0.0
    %87 = vmatpush1.msra.mxu0 %v63
    %88 = vmatprep.subr.mxu0 0.0
    %89 = vmatpush1.msra.mxu0 %v64
    %90 = vmatprep.subr.mxu0 0.0
    %91 = vmatpush1.msra.mxu0 %v65
    %92 = vmatprep.subr.mxu0 0.0
    %93 = vmatpush1.msra.mxu0 %v66
    %94 = vmatprep.subr.mxu0 0.0
    %95 = vmatpush1.msra.mxu0 %v67
    %96 = vmatprep.subr.mxu0 0.0
    %97 = vmatpush1.msra.mxu0 %v68
    %98 = vmatprep.subr.mxu0 0.0
    %99 = vmatpush1.msra.mxu0 %v69
    %100 = vmatprep.subr.mxu0 0.0
    %101 = vmatpush1.msra.mxu0 %v70
    %102 = vmatprep.subr.mxu0 0.0
    %103 = vmatpush1.msra.mxu0 %v71
    %104 = vmatprep.subr.mxu0 0.0
    %105 = vmatpush1.msra.mxu0 %v72
    %106 = vmatprep.subr.mxu0 0.0
    %107 = vmatpush1.msra.mxu0 %v73
    %108 = vmatprep.subr.mxu0 0.0
    %109 = vmatpush1.msra.mxu0 %v74
    %110 = vmatprep.subr.mxu0 0.0
    %111 = vmatpush1.msra.mxu0 %v75
    %112 = vmatprep.subr.mxu0 0.0
    %113 = vmatpush1.msra.mxu0 %v76
    %114 = vmatprep.subr.mxu0 0.0
    %115 = vmatpush1.msra.mxu0 0.0
    %116 = vmatprep.subr.mxu0 0.0
    %117 = vmatpush1.msra.mxu0 0.0
    %118 = vmatprep.subr.mxu0 0.0
    %119 = vmatpush1.msra.mxu0 0.0
    %120 = vmatprep.subr.mxu0 0.0
    %121 = vmatpush1.msra.mxu0 0.0
    %122 = vmatprep.subr.mxu0 0.0
    %123 = vmatpush1.msra.mxu0 0.0
    %124 = vmatprep.subr.mxu0 0.0
    %125 = vmatpush1.msra.mxu0 0.0
    %126 = vmatprep.subr.mxu0 0.0
    %127 = vmatpush1.msra.mxu0 0.0
    %128 = vmatprep.subr.mxu0 0.0
    %129 = vmatpush1.msra.mxu0 0.0
    %130 = vmatprep.subr.mxu0 0.0
    %131 = vmatpush1.msra.mxu0 0.0
    %132 = vmatprep.subr.mxu0 0.0
    %133 = vmatpush1.msra.mxu0 0.0
    %134 = vmatprep.subr.mxu0 0.0
    %135 = vmatpush1.msra.mxu0 0.0
    %136 = vmatprep.subr.mxu0 0.0
    %137 = vmatpush1.msra.mxu0 0.0
    %138 = vmatprep.subr.mxu0 0.0
    %139 = vmatpush1.msra.mxu0 0.0
    %140 = vmatprep.subr.mxu0 0.0
    %141 = vmatpush1.msra.mxu0 0.0
    %142 = vmatprep.subr.mxu0 0.0
    %143 = vmatpush1.msra.mxu0 0.0
    %144 = vmatprep.subr.mxu0 0.0
    %145 = vmatpush1.msra.mxu0 0.0
    %146 = vmatprep.mubr.f32.mxu0 0.0
    %147 = vmatmul.mubr.f32.gmra.mrb[0].mxu0 %v60
    %v148 = vpop.f32.mrb[0].mxu0
    %v149 = vadd.f32 %v81, %v148
    %v150 = vpop.f32.mrb[0].mxu0
    %151 = vdwg.mxu0
    %v152 = vmax.f32 %v149, 0.0
    %v153 = vld [vmem:[#allocation8 + $0x1] sm:$0x1]
    %v154 = vlaneseq
    %v155 = vshrl.u32 %v154, 7
    %v156 = vsub.s32 0, %v155
    %v157 = vrot.slane %v153, %v156
    %158 = vmatprep.subr.mxu0 0.0
    %159 = vmatpush1.msra.mxu0 %v61
    %160 = vmatprep.subr.mxu0 0.0
    %161 = vmatpush1.msra.mxu0 %v62
    %162 = vmatprep.subr.mxu0 0.0
    %163 = vmatpush1.msra.mxu0 %v63
    %164 = vmatprep.subr.mxu0 0.0
    %165 = vmatpush1.msra.mxu0 %v64
    %166 = vmatprep.subr.mxu0 0.0
    %167 = vmatpush1.msra.mxu0 %v65
    %168 = vmatprep.subr.mxu0 0.0
    %169 = vmatpush1.msra.mxu0 %v66
    %170 = vmatprep.subr.mxu0 0.0
    %171 = vmatpush1.msra.mxu0 %v67
    %172 = vmatprep.subr.mxu0 0.0
    %173 = vmatpush1.msra.mxu0 %v68
    %174 = vmatprep.subr.mxu0 0.0
    %175 = vmatpush1.msra.mxu0 %v69
    %176 = vmatprep.subr.mxu0 0.0
    %177 = vmatpush1.msra.mxu0 %v70
    %178 = vmatprep.subr.mxu0 0.0
    %179 = vmatpush1.msra.mxu0 %v71
    %180 = vmatprep.subr.mxu0 0.0
    %181 = vmatpush1.msra.mxu0 %v72
    %182 = vmatprep.subr.mxu0 0.0
    %183 = vmatpush1.msra.mxu0 %v73
    %184 = vmatprep.subr.mxu0 0.0
    %185 = vmatpush1.msra.mxu0 %v74
    %186 = vmatprep.subr.mxu0 0.0
    %187 = vmatpush1.msra.mxu0 %v75
    %188 = vmatprep.subr.mxu0 0.0
    %189 = vmatpush1.msra.mxu0 %v76
    %190 = vmatprep.subr.mxu0 0.0
    %191 = vmatpush1.msra.mxu0 0.0
    %192 = vmatprep.subr.mxu0 0.0
    %193 = vmatpush1.msra.mxu0 0.0
    %194 = vmatprep.subr.mxu0 0.0
    %195 = vmatpush1.msra.mxu0 0.0
    %196 = vmatprep.subr.mxu0 0.0
    %197 = vmatpush1.msra.mxu0 0.0
    %198 = vmatprep.subr.mxu0 0.0
    %199 = vmatpush1.msra.mxu0 0.0
    %200 = vmatprep.subr.mxu0 0.0
    %201 = vmatpush1.msra.mxu0 0.0
    %202 = vmatprep.subr.mxu0 0.0
    %203 = vmatpush1.msra.mxu0 0.0
    %204 = vmatprep.subr.mxu0 0.0
    %205 = vmatpush1.msra.mxu0 0.0
    %206 = vmatprep.subr.mxu0 0.0
    %207 = vmatpush1.msra.mxu0 0.0
    %208 = vmatprep.subr.mxu0 0.0
    %209 = vmatpush1.msra.mxu0 0.0
    %210 = vmatprep.subr.mxu0 0.0
    %211 = vmatpush1.msra.mxu0 0.0
    %212 = vmatprep.subr.mxu0 0.0
    %213 = vmatpush1.msra.mxu0 0.0
    %214 = vmatprep.subr.mxu0 0.0
    %215 = vmatpush1.msra.mxu0 0.0
    %216 = vmatprep.subr.mxu0 0.0
    %217 = vmatpush1.msra.mxu0 0.0
    %218 = vmatprep.subr.mxu0 0.0
    %219 = vmatpush1.msra.mxu0 0.0
    %220 = vmatprep.subr.mxu0 0.0
    %221 = vmatpush1.msra.mxu0 0.0
    %222 = vmatprep.mubr.f32.mxu0 0.0
    %223 = vmatmul.mubr.f32.gmra.mrb[0].mxu0 %v152
    %v224 = vpop.f32.mrb[0].mxu0
    %v225 = vadd.f32 %v157, %v224
    %v226 = vpop.f32.mrb[0].mxu0
    %227 = vdwg.mxu0
    %v228 = vmax.f32 %v225, 0.0
    %v229 = vld [vmem:[#allocation8 + $0x2] sm:$0x1]
    %v230 = vlaneseq
    %v231 = vshrl.u32 %v230, 7
    %v232 = vsub.s32 0, %v231
    %v233 = vrot.slane %v229, %v232
    %234 = vmatprep.subr.mxu0 0.0
    %235 = vmatpush1.msra.mxu0 %v61
    %236 = vmatprep.subr.mxu0 0.0
    %237 = vmatpush1.msra.mxu0 %v62
    %238 = vmatprep.subr.mxu0 0.0
    %239 = vmatpush1.msra.mxu0 %v63
    %240 = vmatprep.subr.mxu0 0.0
    %241 = vmatpush1.msra.mxu0 %v64
    %242 = vmatprep.subr.mxu0 0.0
    %243 = vmatpush1.msra.mxu0 %v65
    %244 = vmatprep.subr.mxu0 0.0
    %245 = vmatpush1.msra.mxu0 %v66
    %246 = vmatprep.subr.mxu0 0.0
    %247 = vmatpush1.msra.mxu0 %v67
    %248 = vmatprep.subr.mxu0 0.0
    %249 = vmatpush1.msra.mxu0 %v68
    %250 = vmatprep.subr.mxu0 0.0
    %251 = vmatpush1.msra.mxu0 %v69
    %252 = vmatprep.subr.mxu0 0.0
    %253 = vmatpush1.msra.mxu0 %v70
    %254 = vmatprep.subr.mxu0 0.0
    %255 = vmatpush1.msra.mxu0 %v71
    %256 = vmatprep.subr.mxu0 0.0
    %257 = vmatpush1.msra.mxu0 %v72
    %258 = vmatprep.subr.mxu0 0.0
    %259 = vmatpush1.msra.mxu0 %v73
    %260 = vmatprep.subr.mxu0 0.0
    %261 = vmatpush1.msra.mxu0 %v74
    %262 = vmatprep.subr.mxu0 0.0
    %263 = vmatpush1.msra.mxu0 %v75
    %264 = vmatprep.subr.mxu0 0.0
    %265 = vmatpush1.msra.mxu0 %v76
    %266 = vmatprep.subr.mxu0 0.0
    %267 = vmatpush1.msra.mxu0 0.0
    %268 = vmatprep.subr.mxu0 0.0
    %269 = vmatpush1.msra.mxu0 0.0
    %270 = vmatprep.subr.mxu0 0.0
    %271 = vmatpush1.msra.mxu0 0.0
    %272 = vmatprep.subr.mxu0 0.0
    %273 = vmatpush1.msra.mxu0 0.0
    %274 = vmatprep.subr.mxu0 0.0
    %275 = vmatpush1.msra.mxu0 0.0
    %276 = vmatprep.subr.mxu0 0.0
    %277 = vmatpush1.msra.mxu0 0.0
    %278 = vmatprep.subr.mxu0 0.0
    %279 = vmatpush1.msra.mxu0 0.0
    %280 = vmatprep.subr.mxu0 0.0
    %281 = vmatpush1.msra.mxu0 0.0
    %282 = vmatprep.subr.mxu0 0.0
    %283 = vmatpush1.msra.mxu0 0.0
    %284 = vmatprep.subr.mxu0 0.0
    %285 = vmatpush1.msra.mxu0 0.0
    %286 = vmatprep.subr.mxu0 0.0
    %287 = vmatpush1.msra.mxu0 0.0
    %288 = vmatprep.subr.mxu0 0.0
    %289 = vmatpush1.msra.mxu0 0.0
    %290 = vmatprep.subr.mxu0 0.0
    %291 = vmatpush1.msra.mxu0 0.0
    %292 = vmatprep.subr.mxu0 0.0
    %293 = vmatpush1.msra.mxu0 0.0
    %294 = vmatprep.subr.mxu0 0.0
    %295 = vmatpush1.msra.mxu0 0.0
    %296 = vmatprep.subr.mxu0 0.0
    %297 = vmatpush1.msra.mxu0 0.0
    %298 = vmatprep.mubr.f32.mxu0 0.0
    %299 = vmatmul.mubr.f32.gmra.mrb[0].mxu0 %v228
    %v300 = vpop.f32.mrb[0].mxu0
    %v301 = vadd.f32 %v233, %v300
    %v302 = vpop.f32.mrb[0].mxu0
    %303 = vdwg.mxu0
    %vm304 = vcmask 89088
    %305 = vst.msk [vmem:[#allocation9] sm:$0xff] %vm304, %v301
    // Predicated region
    $region30: #{tpu_custom_call.1} parent=1 // pred_check
      _
    $region31: #{tpu_custom_call.1} parent=1 // pred_check_branch
      %307 = sbr.rel (0) target = $region33
    $region32: #{tpu_custom_call.1} parent=1 // pred_region
      %s309 = ssub.s32 128, 128
      %310 = vsyncadd [#allocation5], %s309
      %s312 = sshll.u32 [#allocation9], 4
      %s313 = int_to_ptr.vmem [resolvable:$true] %s312
      %315 = dma.vmem_to_hbm [thread:$0]  %s313, 128, %s3, [#allocation5]
    $region33: #{tpu_custom_call.1} parent=1 // pred_fallthru
      _
    // Predicated region
    $region34: #{tpu_custom_call.1} parent=1 // pred_check
      _
    $region35: #{tpu_custom_call.1} parent=1 // pred_check_branch
      %317 = sbr.rel (0) target = $region37
    $region36: #{tpu_custom_call.1} parent=1 // pred_region
      %318 = dma.done [#allocation5], 128
    $region37: #{tpu_custom_call.1} parent=1 // pred_fallthru
      _
    %319 = vsyncpa [#allocation4], 1
    %320 = vsyncpa [#allocation7], 1
    %321 = vsyncpa [#allocation5], 1

</llo_original>
